<compile_context>
chip_gen: v7x
topology: tpu7x:2x2x1
jax: 0.10.0
libtpu: 0.0.40
codegen_flags: <defaults>
</compile_context>

<pallas_src>
import functools

import jax
import jax.numpy as jnp
from jax.experimental import pallas as pl
from jax.experimental.pallas import tpu as pltpu

CODE_SIZE = 36
CODE_PAD = 128          # code dim zero-padded to one full 128-lane vreg
IN_DIM = 28 * 28        # 784
_MEGACORE_SPLIT_MIN_BATCH = 256   # split single-step grids above this (v7x 2 TCs)


def _autoencoder_kernel(x_ref,
                        w1_ref, b1_ref,
                        w2_ref, b2_ref,
                        w3_ref, b3_ref,
                        w4_ref, b4_ref,
                        xnn_ref, code_ref):
    """One batch tile of the full 4-layer MLP; everything resident in VMEM.

    x_ref:   (bb, 784)  f32  (cast to bf16 on-chip)
    w1_ref:  (784, 128) bf16   b1_ref: (1, 128) f32
    w2_ref:  (128, 128) bf16   b2_ref: (1, 128) f32
    w3_ref:  (128, 128) bf16   b3_ref: (1, 128) f32
    w4_ref:  (128, 784) bf16   b4_ref: (1, 784) f32
    xnn_ref: (bb, 784)  bf16   code_ref: (bb, 128) f32 (cols 36: are exact zeros)
    """
    # In-kernel bf16 cast: VPU work hidden under the input DMA, avoids a separate
    # wrapper-side XLA convert pass over HBM.
    x = x_ref[...].astype(jnp.bfloat16)

    # encoder: Linear(784->36, padded to 128) + ReLU  (bf16 MXU, f32 accumulate)
    h1 = jnp.dot(x, w1_ref[...], preferred_element_type=jnp.float32) + b1_ref[...]
    h1 = jnp.maximum(h1, 0.0)

    # encoder: Linear(36->36) (no activation) -> code (lane-dense 128-wide)
    code = jnp.dot(h1.astype(jnp.bfloat16), w2_ref[...],
                   preferred_element_type=jnp.float32) + b2_ref[...]

    # decoder: Linear(36->36) + ReLU
    h2 = jnp.dot(code.astype(jnp.bfloat16), w3_ref[...],
                 preferred_element_type=jnp.float32) + b3_ref[...]
    h2 = jnp.maximum(h2, 0.0)

    # decoder: Linear(36->784) -> reconstruction
    x_nn = jnp.dot(h2.astype(jnp.bfloat16), w4_ref[...],
                   preferred_element_type=jnp.float32) + b4_ref[...]

    xnn_ref[...] = x_nn.astype(xnn_ref.dtype)     # bf16 store: dominant HBM stream
    code_ref[...] = code.astype(code_ref.dtype)   # f32 latent (small)


def prepare_params(params):
    """One-time preprocessing: transpose to (in, out), zero-pad 36->128, cast to bf16.

    Zero padding preserves exact numerics (padded weight rows/cols and bias lanes
    are 0, so padded activation lanes stay 0 through ReLU and downstream matmuls).
    """
    (w1, b1), (w2, b2), (w3, b3), (w4, b4) = params
    pc = CODE_PAD - CODE_SIZE
    w1p = jnp.pad(w1.T, ((0, 0), (0, pc))).astype(jnp.bfloat16)    # (784, 128)
    w2p = jnp.pad(w2.T, ((0, pc), (0, pc))).astype(jnp.bfloat16)   # (128, 128)
    w3p = jnp.pad(w3.T, ((0, pc), (0, pc))).astype(jnp.bfloat16)   # (128, 128)
    w4p = jnp.pad(w4.T, ((0, pc), (0, 0))).astype(jnp.bfloat16)    # (128, 784)
    b1p = jnp.pad(b1, (0, pc)).reshape(1, CODE_PAD).astype(jnp.float32)
    b2p = jnp.pad(b2, (0, pc)).reshape(1, CODE_PAD).astype(jnp.float32)
    b3p = jnp.pad(b3, (0, pc)).reshape(1, CODE_PAD).astype(jnp.float32)
    b4p = b4.reshape(1, IN_DIM).astype(jnp.float32)
    return (w1p, b1p, w2p, b2p, w3p, b3p, w4p, b4p)


def _pick_batch_tile(b, block_b):
    """Batch tile size: multiples of 16 sublanes (bf16 output packing).

    If the whole batch would be a single grid step and it is large, split it so
    the 'parallel' grid axis has >= 2 steps (v7x has 2 TensorCores).
    """
    bb = min(block_b, b)
    if bb >= b:
        if b > _MEGACORE_SPLIT_MIN_BATCH:
            half = -(-b // 2)                       # ceil(b / 2)
            bb = ((half + 15) // 16) * 16           # round up to multiple of 16
        else:
            bb = b                                  # tiny batch: one full-extent block
    else:
        bb = max(16, (bb // 16) * 16)               # round down to multiple of 16
    return bb


@functools.partial(jax.jit, static_argnames=("block_b",))
def autoencoder_forward(x_nchw, prepared, *, block_b=2048):
    """x_nchw: (B, 1, 28, 28) float32.

    Returns (x_nn (B, 784) bf16, code (B, 36) f32).
    Note: x_nn is bf16 (halves the dominant HBM write stream); accumulation is f32.
    """
    b = x_nchw.shape[0]
    # nn.Flatten on NCHW; keep f32 — the bf16 cast happens inside the kernel.
    x_flat = x_nchw.reshape(b, IN_DIM)

    bb = _pick_batch_tile(b, block_b)
    b_pad = pl.cdiv(b, bb) * bb
    if b_pad != b:
        x_flat = jnp.pad(x_flat, ((0, b_pad - b), (0, 0)))
    grid = (b_pad // bb,)

    w1p, b1p, w2p, b2p, w3p, b3p, w4p, b4p = prepared

    batch_spec = lambda last: pl.BlockSpec((bb, last), lambda i: (i, 0))
    const_spec = lambda shape: pl.BlockSpec(shape, lambda i: (0, 0))

    x_nn_p, code_p = pl.pallas_call(
        _autoencoder_kernel,
        out_shape=(
            jax.ShapeDtypeStruct((b_pad, IN_DIM), jnp.bfloat16),
            jax.ShapeDtypeStruct((b_pad, CODE_PAD), jnp.float32),
        ),
        grid=grid,
        in_specs=[
            batch_spec(IN_DIM),
            const_spec((IN_DIM, CODE_PAD)), const_spec((1, CODE_PAD)),
            const_spec((CODE_PAD, CODE_PAD)), const_spec((1, CODE_PAD)),
            const_spec((CODE_PAD, CODE_PAD)), const_spec((1, CODE_PAD)),
            const_spec((CODE_PAD, IN_DIM)), const_spec((1, IN_DIM)),
        ],
        out_specs=(
            batch_spec(IN_DIM),
            batch_spec(CODE_PAD),
        ),
        compiler_params=pltpu.CompilerParams(
            dimension_semantics=("parallel",),   # megacore sharding on v7x
            vmem_limit_bytes=48 << 20,           # fits v7x 64 MiB/TC; ample on v5e/v6e
        ),
    )(x_flat, w1p, b1p, w2p, b2p, w3p, b3p, w4p, b4p)

    # Drop batch padding and the 36->128 lane padding of the code.
    return x_nn_p[:b], code_p[:b, :CODE_SIZE]


def init_params(key):
    """Deterministic init mirroring PyTorch nn.Linear default (U(-1/sqrt(in), 1/sqrt(in)))."""
    def linear(key, in_dim, out_dim):
        kw, kb = jax.random.split(key)
        bound = 1.0 / jnp.sqrt(jnp.float32(in_dim))
        w = jax.random.uniform(kw, (out_dim, in_dim), jnp.float32, -bound, bound)
        b = jax.random.uniform(kb, (out_dim,), jnp.float32, -bound, bound)
        return w, b

    k1, k2, k3, k4 = jax.random.split(key, 4)
    return (
        linear(k1, IN_DIM, CODE_SIZE),     # encoder Linear(784, 36)
        linear(k2, CODE_SIZE, CODE_SIZE),  # encoder Linear(36, 36)
        linear(k3, CODE_SIZE, CODE_SIZE),  # decoder Linear(36, 36)
        linear(k4, CODE_SIZE, IN_DIM),     # decoder Linear(36, 784)
    )


def reference_forward(x_nchw, params):
    """Pure-JAX f32 reference identical to the PyTorch module semantics."""
    b = x_nchw.shape[0]
    x = x_nchw.reshape(b, IN_DIM)
    (w1, b1), (w2, b2), (w3, b3), (w4, b4) = params
    h1 = jnp.maximum(x @ w1.T + b1, 0.0)
    code = h1 @ w2.T + b2
    h2 = jnp.maximum(code @ w3.T + b3, 0.0)
    x_nn = h2 @ w4.T + b4
    return x_nn, code


if __name__ == "__main__":
    key = jax.random.PRNGKey(0)
    k_params, k_x1, k_x2, k_x3 = jax.random.split(key, 4)

    params = init_params(k_params)
    prepared = prepare_params(params)           # one-time: transpose / pad / bf16
    prepared = jax.block_until_ready(prepared)

    # bf16 matmul operands + bf16 x_nn output, f32 accumulation -> loose tolerance
    # vs the f32 reference (non-bit-exact by design).
    TOL = dict(atol=5e-2, rtol=5e-2)

    # Case 1: tiny MNIST-shaped batch (NCHW like the PyTorch DataLoader output).
    x = jax.random.uniform(k_x1, (2, 1, 28, 28), jnp.float32)
    x_nn, code = autoencoder_forward(x, prepared)
    jax.block_until_ready((x_nn, code))
    x_nn_ref, code_ref = reference_forward(x, params)
    assert x_nn.shape == (2, IN_DIM) and code.shape == (2, CODE_SIZE)
    assert jnp.allclose(x_nn.astype(jnp.float32), x_nn_ref, **TOL)
    assert jnp.allclose(code, code_ref, **TOL)

    # Case 2: multi-step batch grid + ragged-batch padding (bb=16, grid=(3,)).
    x2 = jax.random.uniform(k_x2, (40, 1, 28, 28), jnp.float32)
    x_nn2, code2 = autoencoder_forward(x2, prepared, block_b=16)
    jax.block_until_ready((x_nn2, code2))
    x_nn2_ref, code2_ref = reference_forward(x2, params)
    assert x_nn2.shape == (40, IN_DIM) and code2.shape == (40, CODE_SIZE)
    assert jnp.allclose(x_nn2.astype(jnp.float32), x_nn2_ref, **TOL)
    assert jnp.allclose(code2, code2_ref, **TOL)

    # Case 3: large-enough batch to trigger the >=2-step megacore split path.
    x3 = jax.random.uniform(k_x3, (300, 1, 28, 28), jnp.float32)
    x_nn3, code3 = autoencoder_forward(x3, prepared)
    jax.block_until_ready((x_nn3, code3))
    x_nn3_ref, code3_ref = reference_forward(x3, params)
    assert x_nn3.shape == (300, IN_DIM) and code3.shape == (300, CODE_SIZE)
    assert jnp.allclose(x_nn3.astype(jnp.float32), x_nn3_ref, **TOL)
    assert jnp.allclose(code3, code3_ref, **TOL)

    # Mirrors the script-level `torch.reshape(code, (B, 6, 6))` glue (outside the module).
    code_img = code.reshape(code.shape[0], 6, 6)
    jax.block_until_ready(code_img)

    print("KERNEL_OK")
</pallas_src>

<mosaic_0001>
module attributes {stable_mosaic.version = 11 : i64} {
  func.func @_autoencoder_kernel(%arg0: i32, %arg1: memref<2x784xf32, #tpu.memory_space<vmem>>, %arg2: memref<784x128xbf16, #tpu.memory_space<vmem>>, %arg3: memref<1x128xf32, #tpu.memory_space<vmem>>, %arg4: memref<128x128xbf16, #tpu.memory_space<vmem>>, %arg5: memref<1x128xf32, #tpu.memory_space<vmem>>, %arg6: memref<128x128xbf16, #tpu.memory_space<vmem>>, %arg7: memref<1x128xf32, #tpu.memory_space<vmem>>, %arg8: memref<128x784xbf16, #tpu.memory_space<vmem>>, %arg9: memref<1x784xf32, #tpu.memory_space<vmem>>, %arg10: memref<2x784xbf16, #tpu.memory_space<vmem>>, %arg11: memref<2x128xf32, #tpu.memory_space<vmem>>) attributes {dimension_semantics = [#tpu.dimension_semantics<parallel>], iteration_bounds = array<i64: 1>, scalar_prefetch = 0 : i64, scratch_operands = 0 : i64, tpu.core_type = #tpu.core_type<tc>, window_params = [{transform_indices = @transform_0, window_bounds = array<i64: 2, 784>}, {pipeline_mode = #tpu.pipeline_mode<synchronous>, transform_indices = @transform_1, window_bounds = array<i64: 784, 128>}, {pipeline_mode = #tpu.pipeline_mode<synchronous>, transform_indices = @transform_2, window_bounds = array<i64: 1, 128>}, {pipeline_mode = #tpu.pipeline_mode<synchronous>, transform_indices = @transform_3, window_bounds = array<i64: 128, 128>}, {pipeline_mode = #tpu.pipeline_mode<synchronous>, transform_indices = @transform_4, window_bounds = array<i64: 1, 128>}, {pipeline_mode = #tpu.pipeline_mode<synchronous>, transform_indices = @transform_5, window_bounds = array<i64: 128, 128>}, {pipeline_mode = #tpu.pipeline_mode<synchronous>, transform_indices = @transform_6, window_bounds = array<i64: 1, 128>}, {pipeline_mode = #tpu.pipeline_mode<synchronous>, transform_indices = @transform_7, window_bounds = array<i64: 128, 784>}, {pipeline_mode = #tpu.pipeline_mode<synchronous>, transform_indices = @transform_8, window_bounds = array<i64: 1, 784>}, {transform_indices = @transform_9, window_bounds = array<i64: 2, 784>}, {transform_indices = @transform_10, window_bounds = array<i64: 2, 128>}]} {
    %c0 = arith.constant 0 : index
    %c0_0 = arith.constant 0 : index
    %0 = vector.load %arg1[%c0, %c0_0] : memref<2x784xf32, #tpu.memory_space<vmem>>, vector<2x784xf32>
    %1 = arith.truncf %0 : vector<2x784xf32> to vector<2x784xbf16>
    %c0_1 = arith.constant 0 : index
    %c0_2 = arith.constant 0 : index
    %2 = vector.load %arg2[%c0_1, %c0_2] : memref<784x128xbf16, #tpu.memory_space<vmem>>, vector<784x128xbf16>
    %cst = arith.constant dense<0.000000e+00> : vector<2x128xf32>
    %3 = tpu.matmul %1, %2, %cst {dimension_numbers = #tpu.dot_dimension_numbers<[1], [0], [0], [1], [0, 0, 1, 1], [], []>} : vector<2x784xbf16>, vector<784x128xbf16>, vector<2x128xf32> -> vector<2x128xf32>
    %c0_3 = arith.constant 0 : index
    %c0_4 = arith.constant 0 : index
    %4 = vector.load %arg3[%c0_3, %c0_4] : memref<1x128xf32, #tpu.memory_space<vmem>>, vector<1x128xf32>
    %5 = vector.broadcast %4 : vector<1x128xf32> to vector<2x128xf32>
    %6 = arith.addf %3, %5 : vector<2x128xf32>
    %cst_5 = arith.constant 0.000000e+00 : f32
    %7 = vector.broadcast %cst_5 : f32 to vector<2x128xf32>
    %8 = arith.maximumf %6, %7 : vector<2x128xf32>
    %9 = arith.truncf %8 : vector<2x128xf32> to vector<2x128xbf16>
    %c0_6 = arith.constant 0 : index
    %c0_7 = arith.constant 0 : index
    %10 = vector.load %arg4[%c0_6, %c0_7] : memref<128x128xbf16, #tpu.memory_space<vmem>>, vector<128x128xbf16>
    %cst_8 = arith.constant dense<0.000000e+00> : vector<2x128xf32>
    %11 = tpu.matmul %9, %10, %cst_8 {dimension_numbers = #tpu.dot_dimension_numbers<[1], [0], [0], [1], [0, 0, 1, 1], [], []>} : vector<2x128xbf16>, vector<128x128xbf16>, vector<2x128xf32> -> vector<2x128xf32>
    %c0_9 = arith.constant 0 : index
    %c0_10 = arith.constant 0 : index
    %12 = vector.load %arg5[%c0_9, %c0_10] : memref<1x128xf32, #tpu.memory_space<vmem>>, vector<1x128xf32>
    %13 = vector.broadcast %12 : vector<1x128xf32> to vector<2x128xf32>
    %14 = arith.addf %11, %13 : vector<2x128xf32>
    %15 = arith.truncf %14 : vector<2x128xf32> to vector<2x128xbf16>
    %c0_11 = arith.constant 0 : index
    %c0_12 = arith.constant 0 : index
    %16 = vector.load %arg6[%c0_11, %c0_12] : memref<128x128xbf16, #tpu.memory_space<vmem>>, vector<128x128xbf16>
    %cst_13 = arith.constant dense<0.000000e+00> : vector<2x128xf32>
    %17 = tpu.matmul %15, %16, %cst_13 {dimension_numbers = #tpu.dot_dimension_numbers<[1], [0], [0], [1], [0, 0, 1, 1], [], []>} : vector<2x128xbf16>, vector<128x128xbf16>, vector<2x128xf32> -> vector<2x128xf32>
    %c0_14 = arith.constant 0 : index
    %c0_15 = arith.constant 0 : index
    %18 = vector.load %arg7[%c0_14, %c0_15] : memref<1x128xf32, #tpu.memory_space<vmem>>, vector<1x128xf32>
    %19 = vector.broadcast %18 : vector<1x128xf32> to vector<2x128xf32>
    %20 = arith.addf %17, %19 : vector<2x128xf32>
    %cst_16 = arith.constant 0.000000e+00 : f32
    %21 = vector.broadcast %cst_16 : f32 to vector<2x128xf32>
    %22 = arith.maximumf %20, %21 : vector<2x128xf32>
    %23 = arith.truncf %22 : vector<2x128xf32> to vector<2x128xbf16>
    %c0_17 = arith.constant 0 : index
    %c0_18 = arith.constant 0 : index
    %24 = vector.load %arg8[%c0_17, %c0_18] : memref<128x784xbf16, #tpu.memory_space<vmem>>, vector<128x784xbf16>
    %cst_19 = arith.constant dense<0.000000e+00> : vector<2x784xf32>
    %25 = tpu.matmul %23, %24, %cst_19 {dimension_numbers = #tpu.dot_dimension_numbers<[1], [0], [0], [1], [0, 0, 1, 1], [], []>} : vector<2x128xbf16>, vector<128x784xbf16>, vector<2x784xf32> -> vector<2x784xf32>
    %c0_20 = arith.constant 0 : index
    %c0_21 = arith.constant 0 : index
    %26 = vector.load %arg9[%c0_20, %c0_21] : memref<1x784xf32, #tpu.memory_space<vmem>>, vector<1x784xf32>
    %27 = vector.broadcast %26 : vector<1x784xf32> to vector<2x784xf32>
    %28 = arith.addf %25, %27 : vector<2x784xf32>
    %29 = arith.truncf %28 : vector<2x784xf32> to vector<2x784xbf16>
    %c0_22 = arith.constant 0 : index
    %c0_23 = arith.constant 0 : index
    %30 = vector.load %arg10[%c0_22, %c0_23] : memref<2x784xbf16, #tpu.memory_space<vmem>>, vector<2x784xbf16>
    tpu.vector_store %arg10[%c0_22, %c0_23], %29 {strides = array<i32>} : memref<2x784xbf16, #tpu.memory_space<vmem>>, vector<2x784xbf16>,
    %c0_24 = arith.constant 0 : index
    %c0_25 = arith.constant 0 : index
    %31 = vector.load %arg11[%c0_24, %c0_25] : memref<2x128xf32, #tpu.memory_space<vmem>>, vector<2x128xf32>
    tpu.vector_store %arg11[%c0_24, %c0_25], %14 {strides = array<i32>} : memref<2x128xf32, #tpu.memory_space<vmem>>, vector<2x128xf32>,
    return
  }
  func.func @transform_0(%arg0: i32) -> (i32, i32) {
    %c0_i32 = arith.constant 0 : i32
    %c0_i32_0 = arith.constant 0 : i32
    return %arg0, %c0_i32 : i32, i32
  }
  func.func @transform_1(%arg0: i32) -> (i32, i32) {
    %c0_i32 = arith.constant 0 : i32
    %c0_i32_0 = arith.constant 0 : i32
    %c0_i32_1 = arith.constant 0 : i32
    return %c0_i32, %c0_i32_0 : i32, i32
  }
  func.func @transform_2(%arg0: i32) -> (i32, i32) {
    %c0_i32 = arith.constant 0 : i32
    %c0_i32_0 = arith.constant 0 : i32
    %c0_i32_1 = arith.constant 0 : i32
    return %c0_i32, %c0_i32_0 : i32, i32
  }
  func.func @transform_3(%arg0: i32) -> (i32, i32) {
    %c0_i32 = arith.constant 0 : i32
    %c0_i32_0 = arith.constant 0 : i32
    %c0_i32_1 = arith.constant 0 : i32
    return %c0_i32, %c0_i32_0 : i32, i32
  }
  func.func @transform_4(%arg0: i32) -> (i32, i32) {
    %c0_i32 = arith.constant 0 : i32
    %c0_i32_0 = arith.constant 0 : i32
    %c0_i32_1 = arith.constant 0 : i32
    return %c0_i32, %c0_i32_0 : i32, i32
  }
  func.func @transform_5(%arg0: i32) -> (i32, i32) {
    %c0_i32 = arith.constant 0 : i32
    %c0_i32_0 = arith.constant 0 : i32
    %c0_i32_1 = arith.constant 0 : i32
    return %c0_i32, %c0_i32_0 : i32, i32
  }
  func.func @transform_6(%arg0: i32) -> (i32, i32) {
    %c0_i32 = arith.constant 0 : i32
    %c0_i32_0 = arith.constant 0 : i32
    %c0_i32_1 = arith.constant 0 : i32
    return %c0_i32, %c0_i32_0 : i32, i32
  }
  func.func @transform_7(%arg0: i32) -> (i32, i32) {
    %c0_i32 = arith.constant 0 : i32
    %c0_i32_0 = arith.constant 0 : i32
    %c0_i32_1 = arith.constant 0 : i32
    return %c0_i32, %c0_i32_0 : i32, i32
  }
  func.func @transform_8(%arg0: i32) -> (i32, i32) {
    %c0_i32 = arith.constant 0 : i32
    %c0_i32_0 = arith.constant 0 : i32
    %c0_i32_1 = arith.constant 0 : i32
    return %c0_i32, %c0_i32_0 : i32, i32
  }
  func.func @transform_9(%arg0: i32) -> (i32, i32) {
    %c0_i32 = arith.constant 0 : i32
    %c0_i32_0 = arith.constant 0 : i32
    return %arg0, %c0_i32 : i32, i32
  }
  func.func @transform_10(%arg0: i32) -> (i32, i32) {
    %c0_i32 = arith.constant 0 : i32
    %c0_i32_0 = arith.constant 0 : i32
    return %arg0, %c0_i32 : i32, i32
  }
}

</mosaic_0001>

<llo_original>
// kernel: autoencoder_forward.1
$region0: #{autoencoder_forward.1}
  #allocation0 [shape = 'u32[]', space=smem, size = 0x4, offset = 0x4, fixed_abs, tag = 'smem constant byte address 0x4 - core index']
  #allocation1 [shape = 'u32[144,128]{1,0:T(1,128)}', space=vmem, size = 0x12000, scoped, tag = 'internal scratch']
  %s0 = inlined_call_operand.vmem [shape: f32[2,784], index: 0, kind: input, shape index: {}]
  %s1 = inlined_call_operand.vmem [shape: bf16[784,128], index: 1, kind: input, shape index: {}]
  %s2 = inlined_call_operand.vmem [shape: f32[1,128], index: 2, kind: input, shape index: {}]
  %s3 = inlined_call_operand.vmem [shape: bf16[128,128], index: 3, kind: input, shape index: {}]
  %s4 = inlined_call_operand.vmem [shape: f32[1,128], index: 4, kind: input, shape index: {}]
  %s5 = inlined_call_operand.vmem [shape: bf16[128,128], index: 5, kind: input, shape index: {}]
  %s6 = inlined_call_operand.vmem [shape: f32[1,128], index: 6, kind: input, shape index: {}]
  %s7 = inlined_call_operand.vmem [shape: bf16[128,784], index: 7, kind: input, shape index: {}]
  %s8 = inlined_call_operand.vmem [shape: f32[1,784], index: 8, kind: input, shape index: {}]
  %s9 = inlined_call_operand.hbm [shape: bf16[2,784], index: 9, kind: output, shape index: {0}]
  %s10 = inlined_call_operand.hbm [shape: f32[2,128], index: 10, kind: output, shape index: {1}]
  %11 = xla_tuple %s9, %s10
  %s12 = sld [smem:[#allocation0]]
  $region54: #{autoencoder_forward.1} parent=0
    _
  %s14 = ssub.s32 1, %s12
  %s15 = scalar_select 0, %s14, %s12
  $region1: #{autoencoder_forward.1} parent=0
    #allocation2 [shape = 'u8[3584]{0}', space=vmem, size = 0x1000, scoped, tag = 'output window, operand 0, single buffered']
    #allocation3 [shape = 's32[1]{0}', space=sflag, size = 0x4, scoped, tag = 'scoped memory for autoencoder_forward.1']
    #allocation4 [shape = 'u8[1024]{0}', space=vmem, size = 0x400, scoped, tag = 'output window, operand 1, single buffered']
    #allocation5 [shape = 's32[1]{0}', space=sflag, size = 0x4, scoped, tag = 'scoped memory for autoencoder_forward.1']
    %16 = vsyncpa [#allocation3], 0
    %17 = vsyncpa [#allocation5], 0
    // Predicated region
    $region2: #{autoencoder_forward.1} parent=1 // pred_check
      _
    $region3: #{autoencoder_forward.1} parent=1 // pred_check_branch
      %19 = sbr.rel (0) target = $region5
    $region4: #{autoencoder_forward.1} parent=1 // pred_region
      _
    $region5: #{autoencoder_forward.1} parent=1 // pred_fallthru
      _
    // Predicated region
    $region6: #{autoencoder_forward.1} parent=1 // pred_check
      _
    $region7: #{autoencoder_forward.1} parent=1 // pred_check_branch
      %21 = sbr.rel (0) target = $region9
    $region8: #{autoencoder_forward.1} parent=1 // pred_region
      _
    $region9: #{autoencoder_forward.1} parent=1 // pred_fallthru
      _
    // Predicated region
    $region10: #{autoencoder_forward.1} parent=1 // pred_check
      _
    $region11: #{autoencoder_forward.1} parent=1 // pred_check_branch
      %23 = sbr.rel (0) target = $region13
    $region12: #{autoencoder_forward.1} parent=1 // pred_region
      _
    $region13: #{autoencoder_forward.1} parent=1 // pred_fallthru
      _
    // Predicated region
    $region14: #{autoencoder_forward.1} parent=1 // pred_check
      _
    $region15: #{autoencoder_forward.1} parent=1 // pred_check_branch
      %25 = sbr.rel (0) target = $region17
    $region16: #{autoencoder_forward.1} parent=1 // pred_region
      _
    $region17: #{autoencoder_forward.1} parent=1 // pred_fallthru
      _
    // Predicated region
    $region18: #{autoencoder_forward.1} parent=1 // pred_check
      _
    $region19: #{autoencoder_forward.1} parent=1 // pred_check_branch
      %27 = sbr.rel (0) target = $region21
    $region20: #{autoencoder_forward.1} parent=1 // pred_region
      _
    $region21: #{autoencoder_forward.1} parent=1 // pred_fallthru
      _
    // Predicated region
    $region22: #{autoencoder_forward.1} parent=1 // pred_check
      _
    $region23: #{autoencoder_forward.1} parent=1 // pred_check_branch
      %29 = sbr.rel (0) target = $region25
    $region24: #{autoencoder_forward.1} parent=1 // pred_region
      _
    $region25: #{autoencoder_forward.1} parent=1 // pred_fallthru
      _
    // Predicated region
    $region26: #{autoencoder_forward.1} parent=1 // pred_check
      _
    $region27: #{autoencoder_forward.1} parent=1 // pred_check_branch
      %31 = sbr.rel (0) target = $region29
    $region28: #{autoencoder_forward.1} parent=1 // pred_region
      _
    $region29: #{autoencoder_forward.1} parent=1 // pred_fallthru
      _
    // Predicated region
    $region30: #{autoencoder_forward.1} parent=1 // pred_check
      _
    $region31: #{autoencoder_forward.1} parent=1 // pred_check_branch
      %33 = sbr.rel (0) target = $region33
    $region32: #{autoencoder_forward.1} parent=1 // pred_region
      _
    $region33: #{autoencoder_forward.1} parent=1 // pred_fallthru
      _
    // Predicated region
    $region34: #{autoencoder_forward.1} parent=1 // pred_check
      _
    $region35: #{autoencoder_forward.1} parent=1 // pred_check_branch
      %35 = sbr.rel (0) target = $region37
    $region36: #{autoencoder_forward.1} parent=1 // pred_region
      _
    $region37: #{autoencoder_forward.1} parent=1 // pred_fallthru
      _
    %v37 = vld [vmem:[%s0] sm:$0xff]
    %v38 = vld [vmem:[%s0 + $0x8] sm:$0x3f]
    %v41 = vcombine.high %v37, %v37
    %v43 = vunpack.c.l.s4 1983009808
    %v44 = vunpack.c.0.s8 %v43
    %v45 = vlaneseq
    %v46 = vshrl.u32 %v45, 7
    %v47 = vsub.s32 %v44, %v46
    %v48 = vrot.slane %v37, %v47
    %v50 = vunpack.c.l.s4 1983009808
    %v51 = vunpack.c.0.s8 %v50
    %v52 = vlaneseq
    %v53 = vshrl.u32 %v52, 7
    %v54 = vsub.s32 %v51, %v53
    %v55 = vrot.slane %v41, %v54
    %v56 = vcombine.high %v48, %v48
    %v57 = vcombine.high %v55, %v55
    %v58 = vcombine.high %v38, %v38
    %v60 = vunpack.c.l.s4 1983009808
    %v61 = vunpack.c.0.s8 %v60
    %v62 = vlaneseq
    %v63 = vshrl.u32 %v62, 7
    %v64 = vsub.s32 %v61, %v63
    %v65 = vrot.slane %v38, %v64
    %v67 = vunpack.c.l.s4 1983009808
    %v68 = vunpack.c.0.s8 %v67
    %v69 = vlaneseq
    %v70 = vshrl.u32 %v69, 7
    %v71 = vsub.s32 %v68, %v70
    %v72 = vrot.slane %v58, %v71
    %v73 = vcombine.high %v65, %v65
    %v81 = vpack.c.bf16 %v48, %v48
    %v82 = vpack.c.bf16 %v56, %v56
    %v83 = vpack.c.bf16 %v55, %v55
    %v84 = vpack.c.bf16 %v57, %v57
    %v85 = vpack.c.bf16 %v65, %v65
    %v86 = vpack.c.bf16 %v73, %v73
    %v87 = vpack.c.bf16 %v72, %v72
    %v88 = vld [vmem:[%s1] sm:$0xf]
    %v89 = vld [vmem:[%s1 + $0x4] sm:$0xf]
    %v90 = vld [vmem:[%s1 + $0x8] sm:$0xf]
    %v91 = vld [vmem:[%s1 + $0xc] sm:$0xf]
    %v92 = vld [vmem:[%s1 + $0x10] sm:$0xf]
    %v93 = vld [vmem:[%s1 + $0x14] sm:$0xf]
    %v94 = vld [vmem:[%s1 + $0x18] sm:$0xf]
    %v95 = vld [vmem:[%s1 + $0x1c] sm:$0xf]
    %v96 = vld [vmem:[%s1 + $0x20] sm:$0xf]
    %v97 = vld [vmem:[%s1 + $0x24] sm:$0xf]
    %v98 = vld [vmem:[%s1 + $0x28] sm:$0xf]
    %v99 = vld [vmem:[%s1 + $0x2c] sm:$0xf]
    %v100 = vld [vmem:[%s1 + $0x30] sm:$0xf]
    %v101 = vld [vmem:[%s1 + $0x34] sm:$0xf]
    %v102 = vld [vmem:[%s1 + $0x38] sm:$0xf]
    %v103 = vld [vmem:[%s1 + $0x3c] sm:$0xf]
    %v104 = vld [vmem:[%s1 + $0x40] sm:$0xf]
    %v105 = vld [vmem:[%s1 + $0x44] sm:$0xf]
    %v106 = vld [vmem:[%s1 + $0x48] sm:$0xf]
    %v107 = vld [vmem:[%s1 + $0x4c] sm:$0xf]
    %v108 = vld [vmem:[%s1 + $0x50] sm:$0xf]
    %v109 = vld [vmem:[%s1 + $0x54] sm:$0xf]
    %v110 = vld [vmem:[%s1 + $0x58] sm:$0xf]
    %v111 = vld [vmem:[%s1 + $0x5c] sm:$0xf]
    %v112 = vld [vmem:[%s1 + $0x60] sm:$0xf]
    %v113 = vld [vmem:[%s1 + $0x64] sm:$0xf]
    %v114 = vld [vmem:[%s1 + $0x68] sm:$0xf]
    %v115 = vld [vmem:[%s1 + $0x6c] sm:$0xf]
    %v116 = vld [vmem:[%s1 + $0x70] sm:$0xf]
    %v117 = vld [vmem:[%s1 + $0x74] sm:$0xf]
    %v118 = vld [vmem:[%s1 + $0x78] sm:$0xf]
    %v119 = vld [vmem:[%s1 + $0x7c] sm:$0xf]
    %v120 = vld [vmem:[%s1 + $0x80] sm:$0xf]
    %v121 = vld [vmem:[%s1 + $0x84] sm:$0xf]
    %v122 = vld [vmem:[%s1 + $0x88] sm:$0xf]
    %v123 = vld [vmem:[%s1 + $0x8c] sm:$0xf]
    %v124 = vld [vmem:[%s1 + $0x90] sm:$0xf]
    %v125 = vld [vmem:[%s1 + $0x94] sm:$0xf]
    %v126 = vld [vmem:[%s1 + $0x98] sm:$0xf]
    %v127 = vld [vmem:[%s1 + $0x9c] sm:$0xf]
    %v128 = vld [vmem:[%s1 + $0xa0] sm:$0xf]
    %v129 = vld [vmem:[%s1 + $0xa4] sm:$0xf]
    %v130 = vld [vmem:[%s1 + $0xa8] sm:$0xf]
    %v131 = vld [vmem:[%s1 + $0xac] sm:$0xf]
    %v132 = vld [vmem:[%s1 + $0xb0] sm:$0xf]
    %v133 = vld [vmem:[%s1 + $0xb4] sm:$0xf]
    %v134 = vld [vmem:[%s1 + $0xb8] sm:$0xf]
    %v135 = vld [vmem:[%s1 + $0xbc] sm:$0xf]
    %v136 = vld [vmem:[%s1 + $0xc0] sm:$0xf]
    %v137 = vld [vmem:[%s1 + $0xc4] sm:$0xf]
    %v138 = vld [vmem:[%s1 + $0xc8] sm:$0xf]
    %v139 = vld [vmem:[%s1 + $0xcc] sm:$0xf]
    %v140 = vld [vmem:[%s1 + $0xd0] sm:$0xf]
    %v141 = vld [vmem:[%s1 + $0xd4] sm:$0xf]
    %v142 = vld [vmem:[%s1 + $0xd8] sm:$0xf]
    %v143 = vld [vmem:[%s1 + $0xdc] sm:$0xf]
    %v144 = vld [vmem:[%s1 + $0xe0] sm:$0xf]
    %v145 = vld [vmem:[%s1 + $0xe4] sm:$0xf]
    %v146 = vld [vmem:[%s1 + $0xe8] sm:$0xf]
    %v147 = vld [vmem:[%s1 + $0xec] sm:$0xf]
    %v148 = vld [vmem:[%s1 + $0xf0] sm:$0xf]
    %v149 = vld [vmem:[%s1 + $0xf4] sm:$0xf]
    %v150 = vld [vmem:[%s1 + $0xf8] sm:$0xf]
    %v151 = vld [vmem:[%s1 + $0xfc] sm:$0xf]
    %v152 = vld [vmem:[%s1 + $0x100] sm:$0xf]
    %v153 = vld [vmem:[%s1 + $0x104] sm:$0xf]
    %v154 = vld [vmem:[%s1 + $0x108] sm:$0xf]
    %v155 = vld [vmem:[%s1 + $0x10c] sm:$0xf]
    %v156 = vld [vmem:[%s1 + $0x110] sm:$0xf]
    %v157 = vld [vmem:[%s1 + $0x114] sm:$0xf]
    %v158 = vld [vmem:[%s1 + $0x118] sm:$0xf]
    %v159 = vld [vmem:[%s1 + $0x11c] sm:$0xf]
    %v160 = vld [vmem:[%s1 + $0x120] sm:$0xf]
    %v161 = vld [vmem:[%s1 + $0x124] sm:$0xf]
    %v162 = vld [vmem:[%s1 + $0x128] sm:$0xf]
    %v163 = vld [vmem:[%s1 + $0x12c] sm:$0xf]
    %v164 = vld [vmem:[%s1 + $0x130] sm:$0xf]
    %v165 = vld [vmem:[%s1 + $0x134] sm:$0xf]
    %v166 = vld [vmem:[%s1 + $0x138] sm:$0xf]
    %v167 = vld [vmem:[%s1 + $0x13c] sm:$0xf]
    %v168 = vld [vmem:[%s1 + $0x140] sm:$0xf]
    %v169 = vld [vmem:[%s1 + $0x144] sm:$0xf]
    %v170 = vld [vmem:[%s1 + $0x148] sm:$0xf]
    %v171 = vld [vmem:[%s1 + $0x14c] sm:$0xf]
    %v172 = vld [vmem:[%s1 + $0x150] sm:$0xf]
    %v173 = vld [vmem:[%s1 + $0x154] sm:$0xf]
    %v174 = vld [vmem:[%s1 + $0x158] sm:$0xf]
    %v175 = vld [vmem:[%s1 + $0x15c] sm:$0xf]
    %v176 = vld [vmem:[%s1 + $0x160] sm:$0xf]
    %v177 = vld [vmem:[%s1 + $0x164] sm:$0xf]
    %v178 = vld [vmem:[%s1 + $0x168] sm:$0xf]
    %v179 = vld [vmem:[%s1 + $0x16c] sm:$0xf]
    %v180 = vld [vmem:[%s1 + $0x170] sm:$0xf]
    %v181 = vld [vmem:[%s1 + $0x174] sm:$0xf]
    %v182 = vld [vmem:[%s1 + $0x178] sm:$0xf]
    %v183 = vld [vmem:[%s1 + $0x17c] sm:$0xf]
    %v184 = vld [vmem:[%s1 + $0x180] sm:$0xf]
    %v185 = vld [vmem:[%s1 + $0x184] sm:$0xf]
    %v186 = vld [vmem:[%s2] sm:$0x1]
    %v188 = vlaneseq
    %v189 = vshrl.u32 %v188, 7
    %v190 = vsub.s32 0, %v189
    %v191 = vrot.slane %v186, %v190
    %v291 = vunpack.c.l.b16 %v88
    %v292 = vunpack.c.l.b16 %v89
    %v293 = vunpack.c.l.b16 %v90
    %v294 = vunpack.c.l.b16 %v91
    %v295 = vunpack.c.l.b16 %v92
    %v296 = vunpack.c.l.b16 %v93
    %v297 = vunpack.c.l.b16 %v94
    %v298 = vunpack.c.l.b16 %v95
    %v299 = vunpack.c.l.b16 %v96
    %v300 = vunpack.c.l.b16 %v97
    %v301 = vunpack.c.l.b16 %v98
    %v302 = vunpack.c.l.b16 %v99
    %v303 = vunpack.c.l.b16 %v100
    %v304 = vunpack.c.l.b16 %v101
    %v305 = vunpack.c.l.b16 %v102
    %v306 = vunpack.c.l.b16 %v103
    %v307 = vunpack.c.l.b16 %v104
    %v308 = vunpack.c.l.b16 %v105
    %v309 = vunpack.c.l.b16 %v106
    %v310 = vunpack.c.l.b16 %v107
    %v311 = vunpack.c.l.b16 %v108
    %v312 = vunpack.c.l.b16 %v109
    %v313 = vunpack.c.l.b16 %v110
    %v314 = vunpack.c.l.b16 %v111
    %v315 = vunpack.c.l.b16 %v112
    %v316 = vunpack.c.l.b16 %v113
    %v317 = vunpack.c.l.b16 %v114
    %v318 = vunpack.c.l.b16 %v115
    %v319 = vunpack.c.l.b16 %v116
    %v320 = vunpack.c.l.b16 %v117
    %v321 = vunpack.c.l.b16 %v118
    %v322 = vunpack.c.l.b16 %v119
    %v323 = vunpack.c.l.b16 %v120
    %v324 = vunpack.c.l.b16 %v121
    %v325 = vunpack.c.l.b16 %v122
    %v326 = vunpack.c.l.b16 %v123
    %v327 = vunpack.c.l.b16 %v124
    %v328 = vunpack.c.l.b16 %v125
    %v329 = vunpack.c.l.b16 %v126
    %v330 = vunpack.c.l.b16 %v127
    %v331 = vunpack.c.l.b16 %v128
    %v332 = vunpack.c.l.b16 %v129
    %v333 = vunpack.c.l.b16 %v130
    %v334 = vunpack.c.l.b16 %v131
    %v335 = vunpack.c.l.b16 %v132
    %v336 = vunpack.c.l.b16 %v133
    %v337 = vunpack.c.l.b16 %v134
    %v338 = vunpack.c.l.b16 %v135
    %v339 = vunpack.c.l.b16 %v136
    %v340 = vunpack.c.l.b16 %v137
    %v341 = vunpack.c.l.b16 %v138
    %v342 = vunpack.c.l.b16 %v139
    %v343 = vunpack.c.l.b16 %v140
    %v344 = vunpack.c.l.b16 %v141
    %v345 = vunpack.c.l.b16 %v142
    %v346 = vunpack.c.l.b16 %v143
    %v347 = vunpack.c.l.b16 %v144
    %v348 = vunpack.c.l.b16 %v145
    %v349 = vunpack.c.l.b16 %v146
    %v350 = vunpack.c.l.b16 %v147
    %v351 = vunpack.c.l.b16 %v148
    %v352 = vunpack.c.l.b16 %v149
    %v353 = vunpack.c.l.b16 %v150
    %v354 = vunpack.c.l.b16 %v151
    %v355 = vunpack.c.l.b16 %v152
    %v356 = vunpack.c.l.b16 %v153
    %v357 = vunpack.c.l.b16 %v154
    %v358 = vunpack.c.l.b16 %v155
    %v359 = vunpack.c.l.b16 %v156
    %v360 = vunpack.c.l.b16 %v157
    %v361 = vunpack.c.l.b16 %v158
    %v362 = vunpack.c.l.b16 %v159
    %v363 = vunpack.c.l.b16 %v160
    %v364 = vunpack.c.l.b16 %v161
    %v365 = vunpack.c.l.b16 %v162
    %v366 = vunpack.c.l.b16 %v163
    %v367 = vunpack.c.l.b16 %v164
    %v368 = vunpack.c.l.b16 %v165
    %v369 = vunpack.c.l.b16 %v166
    %v370 = vunpack.c.l.b16 %v167
    %v371 = vunpack.c.l.b16 %v168
    %v372 = vunpack.c.l.b16 %v169
    %v373 = vunpack.c.l.b16 %v170
    %v374 = vunpack.c.l.b16 %v171
    %v375 = vunpack.c.l.b16 %v172
    %v376 = vunpack.c.l.b16 %v173
    %v377 = vunpack.c.l.b16 %v174
    %v378 = vunpack.c.l.b16 %v175
    %v379 = vunpack.c.l.b16 %v176
    %v380 = vunpack.c.l.b16 %v177
    %v381 = vunpack.c.l.b16 %v178
    %v382 = vunpack.c.l.b16 %v179
    %v383 = vunpack.c.l.b16 %v180
    %v384 = vunpack.c.l.b16 %v181
    %v385 = vunpack.c.l.b16 %v182
    %v386 = vunpack.c.l.b16 %v183
    %v387 = vunpack.c.l.b16 %v184
    %v388 = vunpack.c.l.b16 %v185
    %v389 = vpack.c.b16 %v292, %v291
    %v390 = vpack.c.b16 %v294, %v293
    %v391 = vpack.c.b16 %v296, %v295
    %v392 = vpack.c.b16 %v298, %v297
    %v393 = vpack.c.b16 %v300, %v299
    %v394 = vpack.c.b16 %v302, %v301
    %v395 = vpack.c.b16 %v304, %v303
    %v396 = vpack.c.b16 %v306, %v305
    %v397 = vpack.c.b16 %v308, %v307
    %v398 = vpack.c.b16 %v310, %v309
    %v399 = vpack.c.b16 %v312, %v311
    %v400 = vpack.c.b16 %v314, %v313
    %v401 = vpack.c.b16 %v316, %v315
    %v402 = vpack.c.b16 %v318, %v317
    %v403 = vpack.c.b16 %v320, %v319
    %v404 = vpack.c.b16 %v322, %v321
    %v405 = vpack.c.b16 %v324, %v323
    %v406 = vpack.c.b16 %v326, %v325
    %v407 = vpack.c.b16 %v328, %v327
    %v408 = vpack.c.b16 %v330, %v329
    %v409 = vpack.c.b16 %v332, %v331
    %v410 = vpack.c.b16 %v334, %v333
    %v411 = vpack.c.b16 %v336, %v335
    %v412 = vpack.c.b16 %v338, %v337
    %v413 = vpack.c.b16 %v340, %v339
    %v414 = vpack.c.b16 %v342, %v341
    %v415 = vpack.c.b16 %v344, %v343
    %v416 = vpack.c.b16 %v346, %v345
    %v417 = vpack.c.b16 %v348, %v347
    %v418 = vpack.c.b16 %v350, %v349
    %v419 = vpack.c.b16 %v352, %v351
    %v420 = vpack.c.b16 %v354, %v353
    %v421 = vpack.c.b16 %v356, %v355
    %v422 = vpack.c.b16 %v358, %v357
    %v423 = vpack.c.b16 %v360, %v359
    %v424 = vpack.c.b16 %v362, %v361
    %v425 = vpack.c.b16 %v364, %v363
    %v426 = vpack.c.b16 %v366, %v365
    %v427 = vpack.c.b16 %v368, %v367
    %v428 = vpack.c.b16 %v370, %v369
    %v429 = vpack.c.b16 %v372, %v371
    %v430 = vpack.c.b16 %v374, %v373
    %v431 = vpack.c.b16 %v376, %v375
    %v432 = vpack.c.b16 %v378, %v377
    %v433 = vpack.c.b16 %v380, %v379
    %v434 = vpack.c.b16 %v382, %v381
    %v435 = vpack.c.b16 %v384, %v383
    %v436 = vpack.c.b16 %v386, %v385
    %v437 = vpack.c.b16 %v388, %v387
    %vm487 = vcmask 130048
    %v489 = vsel %vm487, %v87, 0
    %491 = vmatprep.subr.bf16.mxu0 0
    %492 = vmatpush1.bf16.msra.mxu0 %v389
    %493 = vmatprep.subr.bf16.mxu0 0
    %494 = vmatpush1.bf16.msra.mxu0 %v390
    %495 = vmatprep.subr.bf16.mxu0 0
    %496 = vmatpush1.bf16.msra.mxu0 %v391
    %497 = vmatprep.subr.bf16.mxu0 0
    %498 = vmatpush1.bf16.msra.mxu0 %v392
    %499 = vmatprep.subr.bf16.mxu0 0
    %500 = vmatpush1.bf16.msra.mxu0 %v393
    %501 = vmatprep.subr.bf16.mxu0 0
    %502 = vmatpush1.bf16.msra.mxu0 %v394
    %503 = vmatprep.subr.bf16.mxu0 0
    %504 = vmatpush1.bf16.msra.mxu0 %v395
    %505 = vmatprep.subr.bf16.mxu0 0
    %506 = vmatpush1.bf16.msra.mxu0 %v396
    %507 = vmatprep.subr.bf16.mxu0 0
    %508 = vmatpush1.bf16.msra.mxu0 %v397
    %509 = vmatprep.subr.bf16.mxu0 0
    %510 = vmatpush1.bf16.msra.mxu0 %v398
    %511 = vmatprep.subr.bf16.mxu0 0
    %512 = vmatpush1.bf16.msra.mxu0 %v399
    %513 = vmatprep.subr.bf16.mxu0 0
    %514 = vmatpush1.bf16.msra.mxu0 %v400
    %515 = vmatprep.subr.bf16.mxu0 0
    %516 = vmatpush1.bf16.msra.mxu0 %v401
    %517 = vmatprep.subr.bf16.mxu0 0
    %518 = vmatpush1.bf16.msra.mxu0 %v402
    %519 = vmatprep.subr.bf16.mxu0 0
    %520 = vmatpush1.bf16.msra.mxu0 %v403
    %521 = vmatprep.subr.bf16.mxu0 0
    %522 = vmatpush1.bf16.msra.mxu0 %v404
    %523 = vmatprep.mubr.bf16.mxu0 %v82
    %524 = vmatmul.mubr.bf16.gmra.mrb[0].mxu0 %v81
    %v525 = vpop.f32.mrb[0].mxu0
    %v526 = vadd.f32 %v191, %v525
    %v527 = vpop.f32.mrb[0].mxu0
    %v528 = vpop.f32.mrb[0].mxu0
    %v529 = vpop.f32.mrb[0].mxu0
    %530 = vdwg.mxu0
    %531 = vmatprep.subr.bf16.mxu0 0
    %532 = vmatpush1.bf16.msra.mxu0 %v405
    %533 = vmatprep.subr.bf16.mxu0 0
    %534 = vmatpush1.bf16.msra.mxu0 %v406
    %535 = vmatprep.subr.bf16.mxu0 0
    %536 = vmatpush1.bf16.msra.mxu0 %v407
    %537 = vmatprep.subr.bf16.mxu0 0
    %538 = vmatpush1.bf16.msra.mxu0 %v408
    %539 = vmatprep.subr.bf16.mxu0 0
    %540 = vmatpush1.bf16.msra.mxu0 %v409
    %541 = vmatprep.subr.bf16.mxu0 0
    %542 = vmatpush1.bf16.msra.mxu0 %v410
    %543 = vmatprep.subr.bf16.mxu0 0
    %544 = vmatpush1.bf16.msra.mxu0 %v411
    %545 = vmatprep.subr.bf16.mxu0 0
    %546 = vmatpush1.bf16.msra.mxu0 %v412
    %547 = vmatprep.subr.bf16.mxu0 0
    %548 = vmatpush1.bf16.msra.mxu0 %v413
    %549 = vmatprep.subr.bf16.mxu0 0
    %550 = vmatpush1.bf16.msra.mxu0 %v414
    %551 = vmatprep.subr.bf16.mxu0 0
    %552 = vmatpush1.bf16.msra.mxu0 %v415
    %553 = vmatprep.subr.bf16.mxu0 0
    %554 = vmatpush1.bf16.msra.mxu0 %v416
    %555 = vmatprep.subr.bf16.mxu0 0
    %556 = vmatpush1.bf16.msra.mxu0 %v417
    %557 = vmatprep.subr.bf16.mxu0 0
    %558 = vmatpush1.bf16.msra.mxu0 %v418
    %559 = vmatprep.subr.bf16.mxu0 0
    %560 = vmatpush1.bf16.msra.mxu0 %v419
    %561 = vmatprep.subr.bf16.mxu0 0
    %562 = vmatpush1.bf16.msra.mxu0 %v420
    %563 = vmatprep.mubr.bf16.mxu0 %v84
    %564 = vmatmul.mubr.bf16.gmra.mrb[0].mxu0 %v83
    %v565 = vpop.f32.mrb[0].mxu0
    %v566 = vadd.f32 %v526, %v565
    %v567 = vpop.f32.mrb[0].mxu0
    %v568 = vpop.f32.mrb[0].mxu0
    %v569 = vpop.f32.mrb[0].mxu0
    %570 = vdwg.mxu0
    %571 = vmatprep.subr.bf16.mxu0 0
    %572 = vmatpush1.bf16.msra.mxu0 %v421
    %573 = vmatprep.subr.bf16.mxu0 0
    %574 = vmatpush1.bf16.msra.mxu0 %v422
    %575 = vmatprep.subr.bf16.mxu0 0
    %576 = vmatpush1.bf16.msra.mxu0 %v423
    %577 = vmatprep.subr.bf16.mxu0 0
    %578 = vmatpush1.bf16.msra.mxu0 %v424
    %579 = vmatprep.subr.bf16.mxu0 0
    %580 = vmatpush1.bf16.msra.mxu0 %v425
    %581 = vmatprep.subr.bf16.mxu0 0
    %582 = vmatpush1.bf16.msra.mxu0 %v426
    %583 = vmatprep.subr.bf16.mxu0 0
    %584 = vmatpush1.bf16.msra.mxu0 %v427
    %585 = vmatprep.subr.bf16.mxu0 0
    %586 = vmatpush1.bf16.msra.mxu0 %v428
    %587 = vmatprep.subr.bf16.mxu0 0
    %588 = vmatpush1.bf16.msra.mxu0 %v429
    %589 = vmatprep.subr.bf16.mxu0 0
    %590 = vmatpush1.bf16.msra.mxu0 %v430
    %591 = vmatprep.subr.bf16.mxu0 0
    %592 = vmatpush1.bf16.msra.mxu0 %v431
    %593 = vmatprep.subr.bf16.mxu0 0
    %594 = vmatpush1.bf16.msra.mxu0 %v432
    %595 = vmatprep.subr.bf16.mxu0 0
    %596 = vmatpush1.bf16.msra.mxu0 %v433
    %597 = vmatprep.subr.bf16.mxu0 0
    %598 = vmatpush1.bf16.msra.mxu0 %v434
    %599 = vmatprep.subr.bf16.mxu0 0
    %600 = vmatpush1.bf16.msra.mxu0 %v435
    %601 = vmatprep.subr.bf16.mxu0 0
    %602 = vmatpush1.bf16.msra.mxu0 %v436
    %603 = vmatprep.mubr.bf16.mxu0 %v86
    %604 = vmatmul.mubr.bf16.gmra.mrb[0].mxu0 %v85
    %v605 = vpop.f32.mrb[0].mxu0
    %v606 = vadd.f32 %v566, %v605
    %v607 = vpop.f32.mrb[0].mxu0
    %v608 = vpop.f32.mrb[0].mxu0
    %v609 = vpop.f32.mrb[0].mxu0
    %610 = vdwg.mxu0
    %611 = vmatprep.subr.bf16.mxu0 0
    %612 = vmatpush1.bf16.msra.mxu0 %v437
    %613 = vmatprep.subr.bf16.mxu0 0
    %614 = vmatpush1.bf16.msra.mxu0 0
    %615 = vmatprep.subr.bf16.mxu0 0
    %616 = vmatpush1.bf16.msra.mxu0 0
    %617 = vmatprep.subr.bf16.mxu0 0
    %618 = vmatpush1.bf16.msra.mxu0 0
    %619 = vmatprep.subr.bf16.mxu0 0
    %620 = vmatpush1.bf16.msra.mxu0 0
    %621 = vmatprep.subr.bf16.mxu0 0
    %622 = vmatpush1.bf16.msra.mxu0 0
    %623 = vmatprep.subr.bf16.mxu0 0
    %624 = vmatpush1.bf16.msra.mxu0 0
    %625 = vmatprep.subr.bf16.mxu0 0
    %626 = vmatpush1.bf16.msra.mxu0 0
    %627 = vmatprep.subr.bf16.mxu0 0
    %628 = vmatpush1.bf16.msra.mxu0 0
    %629 = vmatprep.subr.bf16.mxu0 0
    %630 = vmatpush1.bf16.msra.mxu0 0
    %631 = vmatprep.subr.bf16.mxu0 0
    %632 = vmatpush1.bf16.msra.mxu0 0
    %633 = vmatprep.subr.bf16.mxu0 0
    %634 = vmatpush1.bf16.msra.mxu0 0
    %635 = vmatprep.subr.bf16.mxu0 0
    %636 = vmatpush1.bf16.msra.mxu0 0
    %637 = vmatprep.subr.bf16.mxu0 0
    %638 = vmatpush1.bf16.msra.mxu0 0
    %639 = vmatprep.subr.bf16.mxu0 0
    %640 = vmatpush1.bf16.msra.mxu0 0
    %641 = vmatprep.subr.bf16.mxu0 0
    %642 = vmatpush1.bf16.msra.mxu0 0
    %643 = vmatprep.mubr.bf16.mxu0 0
    %644 = vmatmul.mubr.bf16.gmra.mrb[0].mxu0 %v489
    %v645 = vpop.f32.mrb[0].mxu0
    %v646 = vadd.f32 %v606, %v645
    %v647 = vpop.f32.mrb[0].mxu0
    %v648 = vpop.f32.mrb[0].mxu0
    %v649 = vpop.f32.mrb[0].mxu0
    %650 = vdwg.mxu0
    %v651 = vmax.f32 %v646, 0.0
    %v652 = vpack.c.bf16 %v651, %v651
    %v653 = vld [vmem:[%s3] sm:$0xf]
    %v654 = vld [vmem:[%s3 + $0x4] sm:$0xf]
    %v655 = vld [vmem:[%s3 + $0x8] sm:$0xf]
    %v656 = vld [vmem:[%s3 + $0xc] sm:$0xf]
    %v657 = vld [vmem:[%s3 + $0x10] sm:$0xf]
    %v658 = vld [vmem:[%s3 + $0x14] sm:$0xf]
    %v659 = vld [vmem:[%s3 + $0x18] sm:$0xf]
    %v660 = vld [vmem:[%s3 + $0x1c] sm:$0xf]
    %v661 = vld [vmem:[%s3 + $0x20] sm:$0xf]
    %v662 = vld [vmem:[%s3 + $0x24] sm:$0xf]
    %v663 = vld [vmem:[%s3 + $0x28] sm:$0xf]
    %v664 = vld [vmem:[%s3 + $0x2c] sm:$0xf]
    %v665 = vld [vmem:[%s3 + $0x30] sm:$0xf]
    %v666 = vld [vmem:[%s3 + $0x34] sm:$0xf]
    %v667 = vld [vmem:[%s3 + $0x38] sm:$0xf]
    %v668 = vld [vmem:[%s3 + $0x3c] sm:$0xf]
    %v669 = vld [vmem:[%s4] sm:$0x1]
    %v671 = vlaneseq
    %v672 = vshrl.u32 %v671, 7
    %v673 = vsub.s32 0, %v672
    %v674 = vrot.slane %v669, %v673
    %v692 = vunpack.c.l.b16 %v653
    %v693 = vunpack.c.l.b16 %v654
    %v694 = vunpack.c.l.b16 %v655
    %v695 = vunpack.c.l.b16 %v656
    %v696 = vunpack.c.l.b16 %v657
    %v697 = vunpack.c.l.b16 %v658
    %v698 = vunpack.c.l.b16 %v659
    %v699 = vunpack.c.l.b16 %v660
    %v700 = vunpack.c.l.b16 %v661
    %v701 = vunpack.c.l.b16 %v662
    %v702 = vunpack.c.l.b16 %v663
    %v703 = vunpack.c.l.b16 %v664
    %v704 = vunpack.c.l.b16 %v665
    %v705 = vunpack.c.l.b16 %v666
    %v706 = vunpack.c.l.b16 %v667
    %v707 = vunpack.c.l.b16 %v668
    %v708 = vpack.c.b16 %v693, %v692
    %v709 = vpack.c.b16 %v695, %v694
    %v710 = vpack.c.b16 %v697, %v696
    %v711 = vpack.c.b16 %v699, %v698
    %v712 = vpack.c.b16 %v701, %v700
    %v713 = vpack.c.b16 %v703, %v702
    %v714 = vpack.c.b16 %v705, %v704
    %v715 = vpack.c.b16 %v707, %v706
    %724 = vmatprep.subr.bf16.mxu0 0
    %725 = vmatpush1.bf16.msra.mxu0 %v708
    %726 = vmatprep.subr.bf16.mxu0 0
    %727 = vmatpush1.bf16.msra.mxu0 %v709
    %728 = vmatprep.subr.bf16.mxu0 0
    %729 = vmatpush1.bf16.msra.mxu0 %v710
    %730 = vmatprep.subr.bf16.mxu0 0
    %731 = vmatpush1.bf16.msra.mxu0 %v711
    %732 = vmatprep.subr.bf16.mxu0 0
    %733 = vmatpush1.bf16.msra.mxu0 %v712
    %734 = vmatprep.subr.bf16.mxu0 0
    %735 = vmatpush1.bf16.msra.mxu0 %v713
    %736 = vmatprep.subr.bf16.mxu0 0
    %737 = vmatpush1.bf16.msra.mxu0 %v714
    %738 = vmatprep.subr.bf16.mxu0 0
    %739 = vmatpush1.bf16.msra.mxu0 %v715
    %740 = vmatprep.subr.bf16.mxu0 0
    %741 = vmatpush1.bf16.msra.mxu0 0
    %742 = vmatprep.subr.bf16.mxu0 0
    %743 = vmatpush1.bf16.msra.mxu0 0
    %744 = vmatprep.subr.bf16.mxu0 0
    %745 = vmatpush1.bf16.msra.mxu0 0
    %746 = vmatprep.subr.bf16.mxu0 0
    %747 = vmatpush1.bf16.msra.mxu0 0
    %748 = vmatprep.subr.bf16.mxu0 0
    %749 = vmatpush1.bf16.msra.mxu0 0
    %750 = vmatprep.subr.bf16.mxu0 0
    %751 = vmatpush1.bf16.msra.mxu0 0
    %752 = vmatprep.subr.bf16.mxu0 0
    %753 = vmatpush1.bf16.msra.mxu0 0
    %754 = vmatprep.subr.bf16.mxu0 0
    %755 = vmatpush1.bf16.msra.mxu0 0
    %756 = vmatprep.mubr.bf16.mxu0 0
    %757 = vmatmul.mubr.bf16.gmra.mrb[0].mxu0 %v652
    %v758 = vpop.f32.mrb[0].mxu0
    %v759 = vadd.f32 %v674, %v758
    %v760 = vpop.f32.mrb[0].mxu0
    %v761 = vpop.f32.mrb[0].mxu0
    %v762 = vpop.f32.mrb[0].mxu0
    %763 = vdwg.mxu0
    %v764 = vpack.c.bf16 %v759, %v759
    %v765 = vld [vmem:[%s5] sm:$0xf]
    %v766 = vld [vmem:[%s5 + $0x4] sm:$0xf]
    %v767 = vld [vmem:[%s5 + $0x8] sm:$0xf]
    %v768 = vld [vmem:[%s5 + $0xc] sm:$0xf]
    %v769 = vld [vmem:[%s5 + $0x10] sm:$0xf]
    %v770 = vld [vmem:[%s5 + $0x14] sm:$0xf]
    %v771 = vld [vmem:[%s5 + $0x18] sm:$0xf]
    %v772 = vld [vmem:[%s5 + $0x1c] sm:$0xf]
    %v773 = vld [vmem:[%s5 + $0x20] sm:$0xf]
    %v774 = vld [vmem:[%s5 + $0x24] sm:$0xf]
    %v775 = vld [vmem:[%s5 + $0x28] sm:$0xf]
    %v776 = vld [vmem:[%s5 + $0x2c] sm:$0xf]
    %v777 = vld [vmem:[%s5 + $0x30] sm:$0xf]
    %v778 = vld [vmem:[%s5 + $0x34] sm:$0xf]
    %v779 = vld [vmem:[%s5 + $0x38] sm:$0xf]
    %v780 = vld [vmem:[%s5 + $0x3c] sm:$0xf]
    %v781 = vld [vmem:[%s6] sm:$0x1]
    %v783 = vlaneseq
    %v784 = vshrl.u32 %v783, 7
    %v785 = vsub.s32 0, %v784
    %v786 = vrot.slane %v781, %v785
    %v804 = vunpack.c.l.b16 %v765
    %v805 = vunpack.c.l.b16 %v766
    %v806 = vunpack.c.l.b16 %v767
    %v807 = vunpack.c.l.b16 %v768
    %v808 = vunpack.c.l.b16 %v769
    %v809 = vunpack.c.l.b16 %v770
    %v810 = vunpack.c.l.b16 %v771
    %v811 = vunpack.c.l.b16 %v772
    %v812 = vunpack.c.l.b16 %v773
    %v813 = vunpack.c.l.b16 %v774
    %v814 = vunpack.c.l.b16 %v775
    %v815 = vunpack.c.l.b16 %v776
    %v816 = vunpack.c.l.b16 %v777
    %v817 = vunpack.c.l.b16 %v778
    %v818 = vunpack.c.l.b16 %v779
    %v819 = vunpack.c.l.b16 %v780
    %v820 = vpack.c.b16 %v805, %v804
    %v821 = vpack.c.b16 %v807, %v806
    %v822 = vpack.c.b16 %v809, %v808
    %v823 = vpack.c.b16 %v811, %v810
    %v824 = vpack.c.b16 %v813, %v812
    %v825 = vpack.c.b16 %v815, %v814
    %v826 = vpack.c.b16 %v817, %v816
    %v827 = vpack.c.b16 %v819, %v818
    %836 = vmatprep.subr.bf16.mxu0 0
    %837 = vmatpush1.bf16.msra.mxu0 %v820
    %838 = vmatprep.subr.bf16.mxu0 0
    %839 = vmatpush1.bf16.msra.mxu0 %v821
    %840 = vmatprep.subr.bf16.mxu0 0
    %841 = vmatpush1.bf16.msra.mxu0 %v822
    %842 = vmatprep.subr.bf16.mxu0 0
    %843 = vmatpush1.bf16.msra.mxu0 %v823
    %844 = vmatprep.subr.bf16.mxu0 0
    %845 = vmatpush1.bf16.msra.mxu0 %v824
    %846 = vmatprep.subr.bf16.mxu0 0
    %847 = vmatpush1.bf16.msra.mxu0 %v825
    %848 = vmatprep.subr.bf16.mxu0 0
    %849 = vmatpush1.bf16.msra.mxu0 %v826
    %850 = vmatprep.subr.bf16.mxu0 0
    %851 = vmatpush1.bf16.msra.mxu0 %v827
    %852 = vmatprep.subr.bf16.mxu0 0
    %853 = vmatpush1.bf16.msra.mxu0 0
    %854 = vmatprep.subr.bf16.mxu0 0
    %855 = vmatpush1.bf16.msra.mxu0 0
    %856 = vmatprep.subr.bf16.mxu0 0
    %857 = vmatpush1.bf16.msra.mxu0 0
    %858 = vmatprep.subr.bf16.mxu0 0
    %859 = vmatpush1.bf16.msra.mxu0 0
    %860 = vmatprep.subr.bf16.mxu0 0
    %861 = vmatpush1.bf16.msra.mxu0 0
    %862 = vmatprep.subr.bf16.mxu0 0
    %863 = vmatpush1.bf16.msra.mxu0 0
    %864 = vmatprep.subr.bf16.mxu0 0
    %865 = vmatpush1.bf16.msra.mxu0 0
    %866 = vmatprep.subr.bf16.mxu0 0
    %867 = vmatpush1.bf16.msra.mxu0 0
    %868 = vmatprep.mubr.bf16.mxu0 0
    %869 = vmatmul.mubr.bf16.gmra.mrb[0].mxu0 %v764
    %v870 = vpop.f32.mrb[0].mxu0
    %v871 = vadd.f32 %v786, %v870
    %v872 = vpop.f32.mrb[0].mxu0
    %v873 = vpop.f32.mrb[0].mxu0
    %v874 = vpop.f32.mrb[0].mxu0
    %875 = vdwg.mxu0
    %v876 = vmax.f32 %v871, 0.0
    %v877 = vpack.c.bf16 %v876, %v876
    %v878 = vld [vmem:[%s7] sm:$0xff]
    %v879 = vld [vmem:[%s7 + $0x8] sm:$0xff]
    %v880 = vld [vmem:[%s7 + $0x10] sm:$0xff]
    %v881 = vld [vmem:[%s7 + $0x18] sm:$0xf]
    %v882 = vld [vmem:[%s7 + $0x1c] sm:$0xff]
    %v883 = vld [vmem:[%s7 + $0x24] sm:$0xff]
    %v884 = vld [vmem:[%s7 + $0x2c] sm:$0xff]
    %v885 = vld [vmem:[%s7 + $0x34] sm:$0xf]
    %v886 = vld [vmem:[%s7 + $0x38] sm:$0xff]
    %v887 = vld [vmem:[%s7 + $0x40] sm:$0xff]
    %v888 = vld [vmem:[%s7 + $0x48] sm:$0xff]
    %v889 = vld [vmem:[%s7 + $0x50] sm:$0xf]
    %v890 = vld [vmem:[%s7 + $0x54] sm:$0xff]
    %v891 = vld [vmem:[%s7 + $0x5c] sm:$0xff]
    %v892 = vld [vmem:[%s7 + $0x64] sm:$0xff]
    %v893 = vld [vmem:[%s7 + $0x6c] sm:$0xf]
    %v894 = vld [vmem:[%s7 + $0x70] sm:$0xff]
    %v895 = vld [vmem:[%s7 + $0x78] sm:$0xff]
    %v896 = vld [vmem:[%s7 + $0x80] sm:$0xff]
    %v897 = vld [vmem:[%s7 + $0x88] sm:$0xf]
    %v898 = vld [vmem:[%s7 + $0x8c] sm:$0xff]
    %v899 = vld [vmem:[%s7 + $0x94] sm:$0xff]
    %v900 = vld [vmem:[%s7 + $0x9c] sm:$0xff]
    %v901 = vld [vmem:[%s7 + $0xa4] sm:$0xf]
    %v902 = vld [vmem:[%s7 + $0xa8] sm:$0xff]
    %v903 = vld [vmem:[%s7 + $0xb0] sm:$0xff]
    %v904 = vld [vmem:[%s7 + $0xb8] sm:$0xff]
    %v905 = vld [vmem:[%s7 + $0xc0] sm:$0xf]
    %v906 = vld [vmem:[%s7 + $0xc4] sm:$0xff]
    %v907 = vld [vmem:[%s7 + $0xcc] sm:$0xff]
    %v908 = vld [vmem:[%s7 + $0xd4] sm:$0xff]
    %v909 = vld [vmem:[%s7 + $0xdc] sm:$0xf]
    %v910 = vld [vmem:[%s7 + $0xe0] sm:$0xff]
    %v911 = vld [vmem:[%s7 + $0xe8] sm:$0xff]
    %v912 = vld [vmem:[%s7 + $0xf0] sm:$0xff]
    %v913 = vld [vmem:[%s7 + $0xf8] sm:$0xf]
    %v914 = vld [vmem:[%s7 + $0xfc] sm:$0xff]
    %v915 = vld [vmem:[%s7 + $0x104] sm:$0xff]
    %v916 = vld [vmem:[%s7 + $0x10c] sm:$0xff]
    %v917 = vld [vmem:[%s7 + $0x114] sm:$0xf]
    %v918 = vld [vmem:[%s7 + $0x118] sm:$0xff]
    %v919 = vld [vmem:[%s7 + $0x120] sm:$0xff]
    %v920 = vld [vmem:[%s7 + $0x128] sm:$0xff]
    %v921 = vld [vmem:[%s7 + $0x130] sm:$0xf]
    %v922 = vld [vmem:[%s7 + $0x134] sm:$0xff]
    %v923 = vld [vmem:[%s7 + $0x13c] sm:$0xff]
    %v924 = vld [vmem:[%s7 + $0x144] sm:$0xff]
    %v925 = vld [vmem:[%s7 + $0x14c] sm:$0xf]
    %v926 = vld [vmem:[%s7 + $0x150] sm:$0xff]
    %v927 = vld [vmem:[%s7 + $0x158] sm:$0xff]
    %v928 = vld [vmem:[%s7 + $0x160] sm:$0xff]
    %v929 = vld [vmem:[%s7 + $0x168] sm:$0xf]
    %v930 = vld [vmem:[%s7 + $0x16c] sm:$0xff]
    %v931 = vld [vmem:[%s7 + $0x174] sm:$0xff]
    %v932 = vld [vmem:[%s7 + $0x17c] sm:$0xff]
    %v933 = vld [vmem:[%s7 + $0x184] sm:$0xf]
    %v934 = vld [vmem:[%s7 + $0x188] sm:$0xff]
    %v935 = vld [vmem:[%s7 + $0x190] sm:$0xff]
    %v936 = vld [vmem:[%s7 + $0x198] sm:$0xff]
    %v937 = vld [vmem:[%s7 + $0x1a0] sm:$0xf]
    %v938 = vld [vmem:[%s7 + $0x1a4] sm:$0xff]
    %v939 = vld [vmem:[%s7 + $0x1ac] sm:$0xff]
    %v940 = vld [vmem:[%s7 + $0x1b4] sm:$0xff]
    %v941 = vld [vmem:[%s7 + $0x1bc] sm:$0xf]
    %v942 = vld [vmem:[%s8] sm:$0x7f]
    %v944 = vlaneseq
    %v945 = vshrl.u32 %v944, 7
    %v946 = vsub.s32 0, %v945
    %v947 = vrot.slane %v942, %v946
    %v948 = vlaneseq
    %v949 = vshrl.u32 %v948, 7
    %v950 = vsub.s32 1, %v949
    %v951 = vrot.slane %v942, %v950
    %v952 = vlaneseq
    %v953 = vshrl.u32 %v952, 7
    %v954 = vsub.s32 2, %v953
    %v955 = vrot.slane %v942, %v954
    %v956 = vlaneseq
    %v957 = vshrl.u32 %v956, 7
    %v958 = vsub.s32 3, %v957
    %v959 = vrot.slane %v942, %v958
    %v960 = vlaneseq
    %v961 = vshrl.u32 %v960, 7
    %v962 = vsub.s32 4, %v961
    %v963 = vrot.slane %v942, %v962
    %v964 = vlaneseq
    %v965 = vshrl.u32 %v964, 7
    %v966 = vsub.s32 5, %v965
    %v967 = vrot.slane %v942, %v966
    %v968 = vlaneseq
    %v969 = vshrl.u32 %v968, 7
    %v970 = vsub.s32 6, %v969
    %v971 = vrot.slane %v942, %v970
    %v1043 = vunpack.c.l.b16 %v878
    %v1044 = vunpack.c.h.b16 %v878
    %v1045 = vunpack.c.l.b16 %v879
    %v1046 = vunpack.c.h.b16 %v879
    %v1047 = vunpack.c.l.b16 %v880
    %v1048 = vunpack.c.h.b16 %v880
    %v1049 = vunpack.c.l.b16 %v881
    %v1050 = vunpack.c.l.b16 %v882
    %v1051 = vunpack.c.h.b16 %v882
    %v1052 = vunpack.c.l.b16 %v883
    %v1053 = vunpack.c.h.b16 %v883
    %v1054 = vunpack.c.l.b16 %v884
    %v1055 = vunpack.c.h.b16 %v884
    %v1056 = vunpack.c.l.b16 %v885
    %v1057 = vunpack.c.l.b16 %v886
    %v1058 = vunpack.c.h.b16 %v886
    %v1059 = vunpack.c.l.b16 %v887
    %v1060 = vunpack.c.h.b16 %v887
    %v1061 = vunpack.c.l.b16 %v888
    %v1062 = vunpack.c.h.b16 %v888
    %v1063 = vunpack.c.l.b16 %v889
    %v1064 = vunpack.c.l.b16 %v890
    %v1065 = vunpack.c.h.b16 %v890
    %v1066 = vunpack.c.l.b16 %v891
    %v1067 = vunpack.c.h.b16 %v891
    %v1068 = vunpack.c.l.b16 %v892
    %v1069 = vunpack.c.h.b16 %v892
    %v1070 = vunpack.c.l.b16 %v893
    %v1071 = vunpack.c.l.b16 %v894
    %v1072 = vunpack.c.h.b16 %v894
    %v1073 = vunpack.c.l.b16 %v895
    %v1074 = vunpack.c.h.b16 %v895
    %v1075 = vunpack.c.l.b16 %v896
    %v1076 = vunpack.c.h.b16 %v896
    %v1077 = vunpack.c.l.b16 %v897
    %v1078 = vunpack.c.l.b16 %v898
    %v1079 = vunpack.c.h.b16 %v898
    %v1080 = vunpack.c.l.b16 %v899
    %v1081 = vunpack.c.h.b16 %v899
    %v1082 = vunpack.c.l.b16 %v900
    %v1083 = vunpack.c.h.b16 %v900
    %v1084 = vunpack.c.l.b16 %v901
    %v1085 = vunpack.c.l.b16 %v902
    %v1086 = vunpack.c.h.b16 %v902
    %v1087 = vunpack.c.l.b16 %v903
    %v1088 = vunpack.c.h.b16 %v903
    %v1089 = vunpack.c.l.b16 %v904
    %v1090 = vunpack.c.h.b16 %v904
    %v1091 = vunpack.c.l.b16 %v905
    %v1092 = vunpack.c.l.b16 %v906
    %v1093 = vunpack.c.h.b16 %v906
    %v1094 = vunpack.c.l.b16 %v907
    %v1095 = vunpack.c.h.b16 %v907
    %v1096 = vunpack.c.l.b16 %v908
    %v1097 = vunpack.c.h.b16 %v908
    %v1098 = vunpack.c.l.b16 %v909
    %v1099 = vunpack.c.l.b16 %v910
    %v1100 = vunpack.c.h.b16 %v910
    %v1101 = vunpack.c.l.b16 %v911
    %v1102 = vunpack.c.h.b16 %v911
    %v1103 = vunpack.c.l.b16 %v912
    %v1104 = vunpack.c.h.b16 %v912
    %v1105 = vunpack.c.l.b16 %v913
    %v1106 = vunpack.c.l.b16 %v914
    %v1107 = vunpack.c.h.b16 %v914
    %v1108 = vunpack.c.l.b16 %v915
    %v1109 = vunpack.c.h.b16 %v915
    %v1110 = vunpack.c.l.b16 %v916
    %v1111 = vunpack.c.h.b16 %v916
    %v1112 = vunpack.c.l.b16 %v917
    %v1113 = vunpack.c.l.b16 %v918
    %v1114 = vunpack.c.h.b16 %v918
    %v1115 = vunpack.c.l.b16 %v919
    %v1116 = vunpack.c.h.b16 %v919
    %v1117 = vunpack.c.l.b16 %v920
    %v1118 = vunpack.c.h.b16 %v920
    %v1119 = vunpack.c.l.b16 %v921
    %v1120 = vunpack.c.l.b16 %v922
    %v1121 = vunpack.c.h.b16 %v922
    %v1122 = vunpack.c.l.b16 %v923
    %v1123 = vunpack.c.h.b16 %v923
    %v1124 = vunpack.c.l.b16 %v924
    %v1125 = vunpack.c.h.b16 %v924
    %v1126 = vunpack.c.l.b16 %v925
    %v1127 = vunpack.c.l.b16 %v926
    %v1128 = vunpack.c.h.b16 %v926
    %v1129 = vunpack.c.l.b16 %v927
    %v1130 = vunpack.c.h.b16 %v927
    %v1131 = vunpack.c.l.b16 %v928
    %v1132 = vunpack.c.h.b16 %v928
    %v1133 = vunpack.c.l.b16 %v929
    %v1134 = vunpack.c.l.b16 %v930
    %v1135 = vunpack.c.h.b16 %v930
    %v1136 = vunpack.c.l.b16 %v931
    %v1137 = vunpack.c.h.b16 %v931
    %v1138 = vunpack.c.l.b16 %v932
    %v1139 = vunpack.c.h.b16 %v932
    %v1140 = vunpack.c.l.b16 %v933
    %v1141 = vunpack.c.l.b16 %v934
    %v1142 = vunpack.c.h.b16 %v934
    %v1143 = vunpack.c.l.b16 %v935
    %v1144 = vunpack.c.h.b16 %v935
    %v1145 = vunpack.c.l.b16 %v936
    %v1146 = vunpack.c.h.b16 %v936
    %v1147 = vunpack.c.l.b16 %v937
    %v1148 = vunpack.c.l.b16 %v938
    %v1149 = vunpack.c.h.b16 %v938
    %v1150 = vunpack.c.l.b16 %v939
    %v1151 = vunpack.c.h.b16 %v939
    %v1152 = vunpack.c.l.b16 %v940
    %v1153 = vunpack.c.h.b16 %v940
    %v1154 = vunpack.c.l.b16 %v941
    %v1155 = vpack.c.b16 %v1050, %v1043
    %v1156 = vpack.c.b16 %v1051, %v1044
    %v1157 = vpack.c.b16 %v1052, %v1045
    %v1158 = vpack.c.b16 %v1053, %v1046
    %v1159 = vpack.c.b16 %v1054, %v1047
    %v1160 = vpack.c.b16 %v1055, %v1048
    %v1161 = vpack.c.b16 %v1056, %v1049
    %v1162 = vpack.c.b16 %v1064, %v1057
    %v1163 = vpack.c.b16 %v1065, %v1058
    %v1164 = vpack.c.b16 %v1066, %v1059
    %v1165 = vpack.c.b16 %v1067, %v1060
    %v1166 = vpack.c.b16 %v1068, %v1061
    %v1167 = vpack.c.b16 %v1069, %v1062
    %v1168 = vpack.c.b16 %v1070, %v1063
    %v1169 = vpack.c.b16 %v1078, %v1071
    %v1170 = vpack.c.b16 %v1079, %v1072
    %v1171 = vpack.c.b16 %v1080, %v1073
    %v1172 = vpack.c.b16 %v1081, %v1074
    %v1173 = vpack.c.b16 %v1082, %v1075
    %v1174 = vpack.c.b16 %v1083, %v1076
    %v1175 = vpack.c.b16 %v1084, %v1077
    %v1176 = vpack.c.b16 %v1092, %v1085
    %v1177 = vpack.c.b16 %v1093, %v1086
    %v1178 = vpack.c.b16 %v1094, %v1087
    %v1179 = vpack.c.b16 %v1095, %v1088
    %v1180 = vpack.c.b16 %v1096, %v1089
    %v1181 = vpack.c.b16 %v1097, %v1090
    %v1182 = vpack.c.b16 %v1098, %v1091
    %v1183 = vpack.c.b16 %v1106, %v1099
    %v1184 = vpack.c.b16 %v1107, %v1100
    %v1185 = vpack.c.b16 %v1108, %v1101
    %v1186 = vpack.c.b16 %v1109, %v1102
    %v1187 = vpack.c.b16 %v1110, %v1103
    %v1188 = vpack.c.b16 %v1111, %v1104
    %v1189 = vpack.c.b16 %v1112, %v1105
    %v1190 = vpack.c.b16 %v1120, %v1113
    %v1191 = vpack.c.b16 %v1121, %v1114
    %v1192 = vpack.c.b16 %v1122, %v1115
    %v1193 = vpack.c.b16 %v1123, %v1116
    %v1194 = vpack.c.b16 %v1124, %v1117
    %v1195 = vpack.c.b16 %v1125, %v1118
    %v1196 = vpack.c.b16 %v1126, %v1119
    %v1197 = vpack.c.b16 %v1134, %v1127
    %v1198 = vpack.c.b16 %v1135, %v1128
    %v1199 = vpack.c.b16 %v1136, %v1129
    %v1200 = vpack.c.b16 %v1137, %v1130
    %v1201 = vpack.c.b16 %v1138, %v1131
    %v1202 = vpack.c.b16 %v1139, %v1132
    %v1203 = vpack.c.b16 %v1140, %v1133
    %v1204 = vpack.c.b16 %v1148, %v1141
    %v1205 = vpack.c.b16 %v1149, %v1142
    %v1206 = vpack.c.b16 %v1150, %v1143
    %v1207 = vpack.c.b16 %v1151, %v1144
    %v1208 = vpack.c.b16 %v1152, %v1145
    %v1209 = vpack.c.b16 %v1153, %v1146
    %v1210 = vpack.c.b16 %v1154, %v1147
    %1267 = vmatprep.subr.bf16.mxu0 %v1156
    %1268 = vmatpush1.bf16.msra.mxu0 %v1155
    %1269 = vmatprep.subr.bf16.mxu0 %v1163
    %1270 = vmatpush1.bf16.msra.mxu0 %v1162
    %1271 = vmatprep.subr.bf16.mxu0 %v1170
    %1272 = vmatpush1.bf16.msra.mxu0 %v1169
    %1273 = vmatprep.subr.bf16.mxu0 %v1177
    %1274 = vmatpush1.bf16.msra.mxu0 %v1176
    %1275 = vmatprep.subr.bf16.mxu0 %v1184
    %1276 = vmatpush1.bf16.msra.mxu0 %v1183
    %1277 = vmatprep.subr.bf16.mxu0 %v1191
    %1278 = vmatpush1.bf16.msra.mxu0 %v1190
    %1279 = vmatprep.subr.bf16.mxu0 %v1198
    %1280 = vmatpush1.bf16.msra.mxu0 %v1197
    %1281 = vmatprep.subr.bf16.mxu0 %v1205
    %1282 = vmatpush1.bf16.msra.mxu0 %v1204
    %1283 = vmatprep.subr.bf16.mxu0 0
    %1284 = vmatpush1.bf16.msra.mxu0 0
    %1285 = vmatprep.subr.bf16.mxu0 0
    %1286 = vmatpush1.bf16.msra.mxu0 0
    %1287 = vmatprep.subr.bf16.mxu0 0
    %1288 = vmatpush1.bf16.msra.mxu0 0
    %1289 = vmatprep.subr.bf16.mxu0 0
    %1290 = vmatpush1.bf16.msra.mxu0 0
    %1291 = vmatprep.subr.bf16.mxu0 0
    %1292 = vmatpush1.bf16.msra.mxu0 0
    %1293 = vmatprep.subr.bf16.mxu0 0
    %1294 = vmatpush1.bf16.msra.mxu0 0
    %1295 = vmatprep.subr.bf16.mxu0 0
    %1296 = vmatpush1.bf16.msra.mxu0 0
    %1297 = vmatprep.subr.bf16.mxu0 0
    %1298 = vmatpush1.bf16.msra.mxu0 0
    %1299 = vmatprep.mubr.bf16.mxu0 0
    %1300 = vmatmul.mubr.bf16.gmra.mrb[0].mxu0 %v877
    %v1301 = vpop.f32.mrb[0].mxu0
    %v1302 = vadd.f32 %v947, %v1301
    %v1303 = vpop.f32.mrb[0].mxu0
    %v1304 = vadd.f32 %v951, %v1303
    %v1305 = vpop.f32.mrb[0].mxu0
    %v1306 = vpop.f32.mrb[0].mxu0
    %1307 = vdwg.mxu0
    %1308 = vmatprep.subr.bf16.mxu0 %v1158
    %1309 = vmatpush1.bf16.msra.mxu0 %v1157
    %1310 = vmatprep.subr.bf16.mxu0 %v1165
    %1311 = vmatpush1.bf16.msra.mxu0 %v1164
    %1312 = vmatprep.subr.bf16.mxu0 %v1172
    %1313 = vmatpush1.bf16.msra.mxu0 %v1171
    %1314 = vmatprep.subr.bf16.mxu0 %v1179
    %1315 = vmatpush1.bf16.msra.mxu0 %v1178
    %1316 = vmatprep.subr.bf16.mxu0 %v1186
    %1317 = vmatpush1.bf16.msra.mxu0 %v1185
    %1318 = vmatprep.subr.bf16.mxu0 %v1193
    %1319 = vmatpush1.bf16.msra.mxu0 %v1192
    %1320 = vmatprep.subr.bf16.mxu0 %v1200
    %1321 = vmatpush1.bf16.msra.mxu0 %v1199
    %1322 = vmatprep.subr.bf16.mxu0 %v1207
    %1323 = vmatpush1.bf16.msra.mxu0 %v1206
    %1324 = vmatprep.subr.bf16.mxu0 0
    %1325 = vmatpush1.bf16.msra.mxu0 0
    %1326 = vmatprep.subr.bf16.mxu0 0
    %1327 = vmatpush1.bf16.msra.mxu0 0
    %1328 = vmatprep.subr.bf16.mxu0 0
    %1329 = vmatpush1.bf16.msra.mxu0 0
    %1330 = vmatprep.subr.bf16.mxu0 0
    %1331 = vmatpush1.bf16.msra.mxu0 0
    %1332 = vmatprep.subr.bf16.mxu0 0
    %1333 = vmatpush1.bf16.msra.mxu0 0
    %1334 = vmatprep.subr.bf16.mxu0 0
    %1335 = vmatpush1.bf16.msra.mxu0 0
    %1336 = vmatprep.subr.bf16.mxu0 0
    %1337 = vmatpush1.bf16.msra.mxu0 0
    %1338 = vmatprep.subr.bf16.mxu0 0
    %1339 = vmatpush1.bf16.msra.mxu0 0
    %1340 = vmatprep.mubr.bf16.mxu0 0
    %1341 = vmatmul.mubr.bf16.gmra.mrb[0].mxu0 %v877
    %v1342 = vpop.f32.mrb[0].mxu0
    %v1343 = vadd.f32 %v955, %v1342
    %v1344 = vpop.f32.mrb[0].mxu0
    %v1345 = vadd.f32 %v959, %v1344
    %v1346 = vpop.f32.mrb[0].mxu0
    %v1347 = vpop.f32.mrb[0].mxu0
    %1348 = vdwg.mxu0
    %1349 = vmatprep.subr.bf16.mxu0 %v1160
    %1350 = vmatpush1.bf16.msra.mxu0 %v1159
    %1351 = vmatprep.subr.bf16.mxu0 %v1167
    %1352 = vmatpush1.bf16.msra.mxu0 %v1166
    %1353 = vmatprep.subr.bf16.mxu0 %v1174
    %1354 = vmatpush1.bf16.msra.mxu0 %v1173
    %1355 = vmatprep.subr.bf16.mxu0 %v1181
    %1356 = vmatpush1.bf16.msra.mxu0 %v1180
    %1357 = vmatprep.subr.bf16.mxu0 %v1188
    %1358 = vmatpush1.bf16.msra.mxu0 %v1187
    %1359 = vmatprep.subr.bf16.mxu0 %v1195
    %1360 = vmatpush1.bf16.msra.mxu0 %v1194
    %1361 = vmatprep.subr.bf16.mxu0 %v1202
    %1362 = vmatpush1.bf16.msra.mxu0 %v1201
    %1363 = vmatprep.subr.bf16.mxu0 %v1209
    %1364 = vmatpush1.bf16.msra.mxu0 %v1208
    %1365 = vmatprep.subr.bf16.mxu0 0
    %1366 = vmatpush1.bf16.msra.mxu0 0
    %1367 = vmatprep.subr.bf16.mxu0 0
    %1368 = vmatpush1.bf16.msra.mxu0 0
    %1369 = vmatprep.subr.bf16.mxu0 0
    %1370 = vmatpush1.bf16.msra.mxu0 0
    %1371 = vmatprep.subr.bf16.mxu0 0
    %1372 = vmatpush1.bf16.msra.mxu0 0
    %1373 = vmatprep.subr.bf16.mxu0 0
    %1374 = vmatpush1.bf16.msra.mxu0 0
    %1375 = vmatprep.subr.bf16.mxu0 0
    %1376 = vmatpush1.bf16.msra.mxu0 0
    %1377 = vmatprep.subr.bf16.mxu0 0
    %1378 = vmatpush1.bf16.msra.mxu0 0
    %1379 = vmatprep.subr.bf16.mxu0 0
    %1380 = vmatpush1.bf16.msra.mxu0 0
    %1381 = vmatprep.mubr.bf16.mxu0 0
    %1382 = vmatmul.mubr.bf16.gmra.mrb[0].mxu0 %v877
    %v1383 = vpop.f32.mrb[0].mxu0
    %v1384 = vadd.f32 %v963, %v1383
    %v1385 = vpop.f32.mrb[0].mxu0
    %v1386 = vadd.f32 %v967, %v1385
    %v1387 = vpop.f32.mrb[0].mxu0
    %v1388 = vpop.f32.mrb[0].mxu0
    %1389 = vdwg.mxu0
    %1390 = vmatprep.subr.bf16.mxu0 0
    %1391 = vmatpush1.bf16.msra.mxu0 %v1161
    %1392 = vmatprep.subr.bf16.mxu0 0
    %1393 = vmatpush1.bf16.msra.mxu0 %v1168
    %1394 = vmatprep.subr.bf16.mxu0 0
    %1395 = vmatpush1.bf16.msra.mxu0 %v1175
    %1396 = vmatprep.subr.bf16.mxu0 0
    %1397 = vmatpush1.bf16.msra.mxu0 %v1182
    %1398 = vmatprep.subr.bf16.mxu0 0
    %1399 = vmatpush1.bf16.msra.mxu0 %v1189
    %1400 = vmatprep.subr.bf16.mxu0 0
    %1401 = vmatpush1.bf16.msra.mxu0 %v1196
    %1402 = vmatprep.subr.bf16.mxu0 0
    %1403 = vmatpush1.bf16.msra.mxu0 %v1203
    %1404 = vmatprep.subr.bf16.mxu0 0
    %1405 = vmatpush1.bf16.msra.mxu0 %v1210
    %1406 = vmatprep.subr.bf16.mxu0 0
    %1407 = vmatpush1.bf16.msra.mxu0 0
    %1408 = vmatprep.subr.bf16.mxu0 0
    %1409 = vmatpush1.bf16.msra.mxu0 0
    %1410 = vmatprep.subr.bf16.mxu0 0
    %1411 = vmatpush1.bf16.msra.mxu0 0
    %1412 = vmatprep.subr.bf16.mxu0 0
    %1413 = vmatpush1.bf16.msra.mxu0 0
    %1414 = vmatprep.subr.bf16.mxu0 0
    %1415 = vmatpush1.bf16.msra.mxu0 0
    %1416 = vmatprep.subr.bf16.mxu0 0
    %1417 = vmatpush1.bf16.msra.mxu0 0
    %1418 = vmatprep.subr.bf16.mxu0 0
    %1419 = vmatpush1.bf16.msra.mxu0 0
    %1420 = vmatprep.subr.bf16.mxu0 0
    %1421 = vmatpush1.bf16.msra.mxu0 0
    %1422 = vmatprep.mubr.bf16.mxu0 0
    %1423 = vmatmul.mubr.bf16.gmra.mrb[0].mxu0 %v877
    %v1424 = vpop.f32.mrb[0].mxu0
    %v1425 = vadd.f32 %v971, %v1424
    %v1426 = vpop.f32.mrb[0].mxu0
    %v1427 = vpop.f32.mrb[0].mxu0
    %v1428 = vpop.f32.mrb[0].mxu0
    %1429 = vdwg.mxu0
    %v1430 = vpack.c.bf16 %v1302, %v1302
    %v1431 = vpack.c.bf16 %v1304, %v1304
    %v1432 = vpack.c.bf16 %v1343, %v1343
    %v1433 = vpack.c.bf16 %v1345, %v1345
    %v1434 = vpack.c.bf16 %v1384, %v1384
    %v1435 = vpack.c.bf16 %v1386, %v1386
    %v1436 = vpack.c.bf16 %v1425, %v1425
    %v1444 = vcombine.low %v1430, %v1431
    %v1445 = vcombine.low %v1432, %v1433
    %v1446 = vcombine.low %v1434, %v1435
    %v1448 = vunpack.c.l.s4 1966171168
    %v1449 = vunpack.c.0.s8 %v1448
    %v1450 = vlaneseq
    %v1451 = vshrl.u32 %v1450, 7
    %v1452 = vsub.s32 %v1449, %v1451
    %v1453 = vrot.slane %v1444, %v1452
    %v1455 = vunpack.c.l.s4 1966171168
    %v1456 = vunpack.c.0.s8 %v1455
    %v1457 = vlaneseq
    %v1458 = vshrl.u32 %v1457, 7
    %v1459 = vsub.s32 %v1456, %v1458
    %v1460 = vrot.slane %v1445, %v1459
    %v1462 = vunpack.c.l.s4 1966171168
    %v1463 = vunpack.c.0.s8 %v1462
    %v1464 = vlaneseq
    %v1465 = vshrl.u32 %v1464, 7
    %v1466 = vsub.s32 %v1463, %v1465
    %v1467 = vrot.slane %v1446, %v1466
    %v1469 = vunpack.c.l.s4 1966171168
    %v1470 = vunpack.c.0.s8 %v1469
    %v1471 = vlaneseq
    %v1472 = vshrl.u32 %v1471, 7
    %v1473 = vsub.s32 %v1470, %v1472
    %v1474 = vrot.slane %v1436, %v1473
    %v1475 = vcombine.low %v1453, %v1460
    %v1476 = vcombine.low %v1467, %v1474
    %v1478 = vunpack.c.l.s4 1966171168
    %v1479 = vunpack.c.0.s8 %v1478
    %v1480 = vlaneseq
    %v1481 = vshrl.u32 %v1480, 7
    %v1482 = vsub.s32 %v1479, %v1481
    %v1483 = vrot.slane %v1475, %v1482
    %v1485 = vunpack.c.l.s4 1966171168
    %v1486 = vunpack.c.0.s8 %v1485
    %v1487 = vlaneseq
    %v1488 = vshrl.u32 %v1487, 7
    %v1489 = vsub.s32 %v1486, %v1488
    %v1490 = vrot.slane %v1476, %v1489
    %v1491 = vcombine.low %v1483, %v1490
    %vm1493 = vcmask 1040384
    %vm1494 = vcmask 1041409
    %vm1495 = vmor %vm1494, %vm1493
    %vm1496 = vcmask 1042434
    %vm1497 = vmor %vm1496, %vm1495
    %vm1498 = vcmask 1043459
    %vm1499 = vmor %vm1498, %vm1497
    %vm1500 = vcmask 1044484
    %vm1501 = vmor %vm1500, %vm1499
    %vm1502 = vcmask 1045509
    %vm1503 = vmor %vm1502, %vm1501
    %vm1504 = vcmask 129030
    %vm1505 = vmor %vm1504, %vm1503
    %1506 = vst.msk [vmem:[#allocation2] sm:$0x7f] %vm1505, %v1491
    %1507 = vst [vmem:[#allocation4] sm:$0x3] %v759
    // Predicated region
    $region38: #{autoencoder_forward.1} parent=1 // pred_check
      _
    $region39: #{autoencoder_forward.1} parent=1 // pred_check_branch
      %1509 = sbr.rel (0) target = $region41
    $region40: #{autoencoder_forward.1} parent=1 // pred_region
      %s1511 = ssub.s32 112, 112
      %1512 = vsyncadd [#allocation3], %s1511
      %s1514 = sshll.u32 [#allocation2], 4
      %s1515 = int_to_ptr.vmem [resolvable:$true] %s1514
      %1517 = dma.vmem_to_hbm [thread:$0]  %s1515, 112, %s9, [#allocation3]
    $region41: #{autoencoder_forward.1} parent=1 // pred_fallthru
      _
    // Predicated region
    $region42: #{autoencoder_forward.1} parent=1 // pred_check
      _
    $region43: #{autoencoder_forward.1} parent=1 // pred_check_branch
      %1519 = sbr.rel (0) target = $region45
    $region44: #{autoencoder_forward.1} parent=1 // pred_region
      %s1521 = ssub.s32 32, 32
      %1522 = vsyncadd [#allocation5], %s1521
      %s1524 = sshll.u32 [#allocation4], 4
      %s1525 = int_to_ptr.vmem [resolvable:$true] %s1524
      %1527 = dma.vmem_to_hbm [thread:$0]  %s1525, 32, %s10, [#allocation5]
    $region45: #{autoencoder_forward.1} parent=1 // pred_fallthru
      _
    // Predicated region
    $region46: #{autoencoder_forward.1} parent=1 // pred_check
      _
    $region47: #{autoencoder_forward.1} parent=1 // pred_check_branch
      %1529 = sbr.rel (0) target = $region49
    $region48: #{autoencoder_forward.1} parent=1 // pred_region
      %1530 = dma.done [#allocation3], 112
    $region49: #{autoencoder_forward.1} parent=1 // pred_fallthru
      _
    // Predicated region
    $region50: #{autoencoder_forward.1} parent=1 // pred_check
      _
    $region51: #{autoencoder_forward.1} parent=1 // pred_check_branch
      %1532 = sbr.rel (0) target = $region53
    $region52: #{autoencoder_forward.1} parent=1 // pred_region
      %1533 = dma.done [#allocation5], 32
    $region53: #{autoencoder_forward.1} parent=1 // pred_fallthru
      _
    %1534 = vsyncpa [#allocation3], 1
    %1535 = vsyncpa [#allocation5], 1

</llo_original>
